<compile_context>
chip_gen: v7x
topology: tpu7x:2x2x1
jax: 0.10.0
libtpu: 0.0.40
codegen_flags: <defaults>
</compile_context>

<pallas_src>
import jax
import jax.numpy as jnp
from jax import lax
from jax.experimental import pallas as pl
from jax.experimental.pallas import tpu as pltpu

IN_FEATURES = 1024  # fixed by the module: nn.Linear(1024, z, bias=False)


def _round_up(n, m):
    return ((n + m - 1) // m) * m


def _compression_linear_kernel(x_ref, w_ref, o_ref):
    # x_ref: (TB, 1024)  w_ref: (1024, z_pad)  o_ref: (TB, z_pad)
    # Native (M,K)x(K,N) matmul on the MXU; accumulate in f32.
    o_ref[...] = jnp.dot(
        x_ref[...], w_ref[...], preferred_element_type=jnp.float32
    ).astype(o_ref.dtype)


def prepare_weight(weight, compute_dtype=jnp.bfloat16):
    """One-time transform of nn.Linear.weight (z, 1024) -> (1024, z_pad).

    - cast to `compute_dtype` (bf16 recommended on all TPU generations),
    - transpose so the kernel contracts (M,K)x(K,N) with no in-kernel transpose,
    - zero-pad z up to a multiple of 128 so output stores are full-lane.

    Do this once at parameter-init time, not per forward call.
    """
    z, k = weight.shape
    assert k == IN_FEATURES, f"weight must be (z, {IN_FEATURES}), got {weight.shape}"
    w_t = weight.astype(compute_dtype).T            # (1024, z): one-time HBM copy
    z_pad = _round_up(max(z, 1), 128)
    if z_pad != z:
        w_t = jnp.pad(w_t, ((0, 0), (0, z_pad - z)))
    return w_t


def compression_linear_no_bias(x, weight_t, z, *, block_b=1024,
                               force_pallas=False, out_dtype=None):
    """Pallas equivalent of CompressionLinearNoBias.forward.

    Args:
      x:        (B, ...) with prod(trailing) == 1024, flattened like x.view(B, 1024).
                Feed activations already in the weight's compute dtype (bf16) --
                casting here costs an extra HBM pass.
      weight_t: prepared weight from `prepare_weight`, shape (1024, z_pad).
      z:        true output feature count (<= z_pad; padding is sliced off).
    Returns:
      (B, z) in `out_dtype` (default: x.dtype).
    """
    B = x.shape[0]
    x2 = x.reshape(B, IN_FEATURES)                  # glue reshape stays in plain JAX
    k, z_pad = weight_t.shape
    assert k == IN_FEATURES and z_pad % 128 == 0 and 0 < z <= z_pad
    out_dtype = x.dtype if out_dtype is None else out_dtype

    if x2.dtype != weight_t.dtype:
        # Prefer matching dtypes from the caller; this cast is an extra HBM pass.
        x2 = x2.astype(weight_t.dtype)

    # Small-problem fast path: a standalone pallas_call is pure launch overhead
    # at this scale -- leave it to XLA (or fuse with neighbours).
    if not force_pallas and B * z_pad <= 64 * 1024:
        y = jnp.dot(x2, weight_t, preferred_element_type=jnp.float32).astype(out_dtype)
        return y[:, :z] if z != z_pad else y

    # Batch tile: even number of >=2 grid steps whenever B > 8 so v7x's two
    # TensorCores both get work under megacore sharding; tiles are multiples of 8.
    if B <= 8:
        tb = B                                      # single full-extent block
    else:
        steps = pl.cdiv(B, block_b)
        steps += steps % 2                          # even, >= 2
        tb = min(_round_up(pl.cdiv(B, steps), 8), _round_up(B, 8))
    grid = (pl.cdiv(B, tb),)

    itm = lambda d: jnp.dtype(d).itemsize
    # Double-buffered x tile + resident weight (2 bufs) + double-buffered out tile.
    needed = (2 * tb * IN_FEATURES * itm(x2.dtype)
              + 2 * IN_FEATURES * z_pad * itm(weight_t.dtype)
              + 2 * tb * z_pad * itm(out_dtype))
    vmem_limit = int(min(max(needed + (8 << 20), 32 << 20), 64 << 20))

    cost = pl.CostEstimate(
        flops=2 * B * IN_FEATURES * z_pad,
        transcendentals=0,
        bytes_accessed=(x2.size * itm(x2.dtype)
                        + weight_t.size * itm(weight_t.dtype)
                        + B * z_pad * itm(out_dtype)),
    )

    y = pl.pallas_call(
        _compression_linear_kernel,
        out_shape=jax.ShapeDtypeStruct((B, z_pad), out_dtype),
        grid=grid,
        in_specs=[
            pl.BlockSpec((tb, IN_FEATURES), lambda i: (i, 0)),      # x tile, walks batch
            pl.BlockSpec((IN_FEATURES, z_pad), lambda i: (0, 0)),   # weight resident
        ],
        out_specs=pl.BlockSpec((tb, z_pad), lambda i: (i, 0)),
        compiler_params=pltpu.CompilerParams(
            dimension_semantics=("parallel",),   # batch axis -> v7x megacore sharding
            vmem_limit_bytes=vmem_limit,
        ),
        cost_estimate=cost,
    )(x2, weight_t)
    # TODO(synk): for very large z on v7x (64 MiB/TC VMEM), single-buffer the
    # resident weight (pipeline_mode=pl.Buffered(1)) or tile z with a second
    # "parallel" grid axis; sweep pl.Buffered(3) on the x input if the bundle
    # shows exposed DMA waits at the chosen TB.
    # TODO(synk): at production scale fuse this linear with adjacent model ops
    # into one pallas_call (see the small-B fast path above).
    return y[:, :z] if z != z_pad else y


if __name__ == "__main__":
    # Module config: CompressionLinearNoBias(z, a) -> Linear(1024, z, bias=False).
    # `a` is unused by the layer.  z chosen lane-dense (multiple of 128).
    z, a = 128, 16
    B = 16

    key = jax.random.PRNGKey(0)
    k_x, k_w = jax.random.split(key)

    # Input shaped like a feature map that flattens to 1024 (4*16*16).
    x_f32 = jax.random.normal(k_x, (B, 4, 16, 16), dtype=jnp.float32)
    # nn.Linear default init: uniform(-1/sqrt(fan_in), 1/sqrt(fan_in)).
    bound = 1.0 / jnp.sqrt(jnp.float32(IN_FEATURES))
    w_f32 = jax.random.uniform(
        k_w, (z, IN_FEATURES), dtype=jnp.float32, minval=-bound, maxval=bound
    )

    # ---- f32 Pallas path: tight numerics check of the kernel itself ----
    w_t_f32 = prepare_weight(w_f32, compute_dtype=jnp.float32)
    y_f32 = compression_linear_no_bias(x_f32, w_t_f32, z, force_pallas=True)
    jax.block_until_ready(y_f32)
    y_ref = lax.dot_general(
        x_f32.reshape(B, IN_FEATURES), w_f32,
        dimension_numbers=(((1,), (1,)), ((), ())),
        precision=lax.Precision.HIGHEST,
        preferred_element_type=jnp.float32,
    )
    assert y_f32.shape == (B, z)
    assert jnp.allclose(y_f32, y_ref, atol=1e-3, rtol=1e-3)

    # ---- bf16 Pallas path: recommended production dtype (f32 accumulate) ----
    x_bf = x_f32.astype(jnp.bfloat16)          # stand-in for a bf16-producing prior layer
    w_t_bf = prepare_weight(w_f32, compute_dtype=jnp.bfloat16)
    y_bf = compression_linear_no_bias(x_bf, w_t_bf, z, force_pallas=True)
    jax.block_until_ready(y_bf)
    y_ref_bf = jnp.dot(
        x_bf.reshape(B, IN_FEATURES).astype(jnp.float32),
        w_t_bf[:, :z].astype(jnp.float32),
        precision=lax.Precision.HIGHEST,
    )
    assert y_bf.shape == (B, z)
    assert jnp.allclose(y_bf.astype(jnp.float32), y_ref_bf, atol=3e-2, rtol=3e-2)

    # ---- default call: small-B fast path (no pallas_call), same math ----
    y_fast = compression_linear_no_bias(x_bf, w_t_bf, z)
    jax.block_until_ready(y_fast)
    assert jnp.allclose(y_fast.astype(jnp.float32), y_bf.astype(jnp.float32),
                        atol=3e-2, rtol=3e-2)

    print("KERNEL_OK")
</pallas_src>

<mosaic_0001>
module attributes {stable_mosaic.version = 11 : i64} {
  func.func @_compression_linear_kernel(%arg0: i32, %arg1: memref<8x1024xf32, #tpu.memory_space<vmem>>, %arg2: memref<1024x128xf32, #tpu.memory_space<vmem>>, %arg3: memref<8x128xf32, #tpu.memory_space<vmem>>) attributes {dimension_semantics = [#tpu.dimension_semantics<parallel>], iteration_bounds = array<i64: 2>, scalar_prefetch = 0 : i64, scratch_operands = 0 : i64, tpu.core_type = #tpu.core_type<tc>, window_params = [{transform_indices = @transform_0, window_bounds = array<i64: 8, 1024>}, {pipeline_mode = #tpu.pipeline_mode<synchronous>, transform_indices = @transform_1, window_bounds = array<i64: 1024, 128>}, {transform_indices = @transform_2, window_bounds = array<i64: 8, 128>}]} {
    %c0 = arith.constant 0 : index
    %c0_0 = arith.constant 0 : index
    %0 = vector.load %arg1[%c0, %c0_0] : memref<8x1024xf32, #tpu.memory_space<vmem>>, vector<8x1024xf32>
    %c0_1 = arith.constant 0 : index
    %c0_2 = arith.constant 0 : index
    %1 = vector.load %arg2[%c0_1, %c0_2] : memref<1024x128xf32, #tpu.memory_space<vmem>>, vector<1024x128xf32>
    %cst = arith.constant dense<0.000000e+00> : vector<8x128xf32>
    %2 = tpu.matmul %0, %1, %cst {dimension_numbers = #tpu.dot_dimension_numbers<[1], [0], [0], [1], [0, 0, 1, 1], [], []>} : vector<8x1024xf32>, vector<1024x128xf32>, vector<8x128xf32> -> vector<8x128xf32>
    %c0_3 = arith.constant 0 : index
    %c0_4 = arith.constant 0 : index
    %3 = vector.load %arg3[%c0_3, %c0_4] : memref<8x128xf32, #tpu.memory_space<vmem>>, vector<8x128xf32>
    tpu.vector_store %arg3[%c0_3, %c0_4], %2 {strides = array<i32>} : memref<8x128xf32, #tpu.memory_space<vmem>>, vector<8x128xf32>,
    return
  }
  func.func @transform_0(%arg0: i32) -> (i32, i32) {
    %c0_i32 = arith.constant 0 : i32
    %c0_i32_0 = arith.constant 0 : i32
    return %arg0, %c0_i32 : i32, i32
  }
  func.func @transform_1(%arg0: i32) -> (i32, i32) {
    %c0_i32 = arith.constant 0 : i32
    %c0_i32_0 = arith.constant 0 : i32
    %c0_i32_1 = arith.constant 0 : i32
    return %c0_i32, %c0_i32_0 : i32, i32
  }
  func.func @transform_2(%arg0: i32) -> (i32, i32) {
    %c0_i32 = arith.constant 0 : i32
    %c0_i32_0 = arith.constant 0 : i32
    return %arg0, %c0_i32 : i32, i32
  }
}

</mosaic_0001>

<llo_original>
// kernel: tpu_custom_call.1
$region0: #{tpu_custom_call.1}
  #allocation0 [shape = 'u32[]', space=smem, size = 0x4, offset = 0x4, fixed_abs, tag = 'smem constant byte address 0x4 - core index']
  #allocation1 [shape = 'u32[144,128]{1,0:T(1,128)}', space=vmem, size = 0x12000, scoped, tag = 'internal scratch']
  %s0 = inlined_call_operand.hbm [shape: f32[16,1024], index: 0, kind: input, shape index: {}]
  %s1 = inlined_call_operand.hbm [shape: f32[1024,128], index: 1, kind: input, shape index: {}]
  %s2 = inlined_call_operand.hbm [shape: f32[16,128], index: 2, kind: output, shape index: {}]
  %s3 = sld [smem:[#allocation0]]
  $region49: #{tpu_custom_call.1} parent=0
    _
  %s5 = ssub.s32 1, %s3
  %s6 = scalar_select 0, %s5, %s3
  $region1: #{tpu_custom_call.1} parent=0
    #allocation2 [shape = 'u8[65536]{0}', space=vmem, size = 0x10000, scoped, tag = 'input window, operand 0']
    #allocation3 [shape = 's32[2]{0}', space=sflag, size = 0x8, scoped, tag = 'scoped memory for tpu_custom_call.1']
    #allocation4 [shape = 's32[2]{0}', space=sflag, size = 0x8, scoped, tag = 'scoped memory for tpu_custom_call.1']
    #allocation5 [shape = 'u8[524288]{0}', space=vmem, size = 0x80000, scoped, tag = 'input window, operand 1, single buffered']
    #allocation6 [shape = 's32[1]{0}', space=sflag, size = 0x4, scoped, tag = 'scoped memory for tpu_custom_call.1']
    #allocation7 [shape = 'u8[8192]{0}', space=vmem, size = 0x2000, scoped, tag = 'output window, operand 0']
    %7 = vsyncpa [#allocation3], 0
    %s8 = scalar_lea.sflag [#allocation3], 1
    %9 = vsyncpa %s8, 0
    %10 = vsyncpa [#allocation6], 0
    %11 = vsyncpa [#allocation4], 0
    %s12 = scalar_lea.sflag [#allocation4], 1
    %13 = vsyncpa %s12, 0
    loop: start=0, step=1, limit=4
    $region2: #{tpu_custom_call.1} parent=1 // loop_pre_header
      _
    $region3: #{tpu_custom_call.1} parent=1 // loop_header
      %s15 = sphi 0, %s19
      %p16 = scmp.ge.s32.totalorder %s15, 4
      %s25 = sphi 0, %s27
      %s28 = sphi 0, %s25
      %s29 = sphi 0, %s28
      %s45 = sphi 0, %s29
      %s49 = sphi 0, %s49
      %s51 = sphi 0, %s49
      %s52 = sphi 0, %s51
      %s66 = sphi 0, %s52
      %s72 = sphi 0, %s74
      %s75 = sphi 0, %s72
      %s76 = sphi 0, %s75
      %s92 = sphi 0, %s76
    $region4: #{tpu_custom_call.1} parent=1 // loop_header_branch
      %18 = sbr.rel (%p16) target = $region8
    $region5: #{tpu_custom_call.1} parent=1 // loop_body
      %s20 = ssub.s32 %s15, 1
      %s21 = ssub.s32 %s15, 2
      %s22 = sadd.s32 %s15, 1
      %s23 = ssub.s32 %s15, %s22
      %p24 = scmp.eq.s32.totalorder %s23, 0
      %s26 = sadd.s32 %s25, 1
      %s27 = scalar_select %p24, %s25, %s26
      %p30 = pneg %p24
      %p31 = scmp.eq.s32.totalorder %s15, 1
      %p32 = por %p30, %p31
      %p33 = scmp.ne.s32.totalorder %s25, %s28
      %p34 = scmp.eq.s32.totalorder %s15, 0
      %p35 = por %p33, %p34
      %p36 = scmp.ne.s32.totalorder %s25, %s28
      %p37 = scmp.eq.s32.totalorder %s20, 1
      %p38 = por %p36, %p37
      %p39 = scmp.ne.s32.totalorder %s28, %s29
      %p40 = scmp.eq.s32.totalorder %s20, 0
      %p41 = por %p39, %p40
      %p42 = scmp.ne.s32.totalorder %s28, %s29
      %p43 = scmp.eq.s32.totalorder %s21, 1
      %p44 = por %p42, %p43
      %p46 = scmp.ne.s32.totalorder %s29, %s45
      %p47 = scmp.eq.s32.totalorder %s21, 0
      %p48 = por %p46, %p47
      %s50 = sadd.s32 %s49, 1
      %p53 = scmp.eq.s32.totalorder %s15, 1
      %p54 = scmp.ne.s32.totalorder %s49, %s51
      %p55 = scmp.eq.s32.totalorder %s15, 0
      %p56 = por %p54, %p55
      %p57 = scmp.ne.s32.totalorder %s49, %s51
      %p58 = scmp.eq.s32.totalorder %s20, 1
      %p59 = por %p57, %p58
      %p60 = scmp.ne.s32.totalorder %s51, %s52
      %p61 = scmp.eq.s32.totalorder %s20, 0
      %p62 = por %p60, %p61
      %p63 = scmp.ne.s32.totalorder %s51, %s52
      %p64 = scmp.eq.s32.totalorder %s21, 1
      %p65 = por %p63, %p64
      %p67 = scmp.ne.s32.totalorder %s52, %s66
      %p68 = scmp.eq.s32.totalorder %s21, 0
      %p69 = por %p67, %p68
      %s70 = ssub.s32 %s15, %s22
      %p71 = scmp.eq.s32.totalorder %s70, 0
      %s73 = sadd.s32 %s72, 1
      %s74 = scalar_select %p71, %s72, %s73
      %p77 = pneg %p71
      %p78 = scmp.eq.s32.totalorder %s15, 1
      %p79 = por %p77, %p78
      %p80 = scmp.ne.s32.totalorder %s72, %s75
      %p81 = scmp.eq.s32.totalorder %s15, 0
      %p82 = por %p80, %p81
      %p83 = scmp.ne.s32.totalorder %s72, %s75
      %p84 = scmp.eq.s32.totalorder %s20, 1
      %p85 = por %p83, %p84
      %p86 = scmp.ne.s32.totalorder %s75, %s76
      %p87 = scmp.eq.s32.totalorder %s20, 0
      %p88 = por %p86, %p87
      %p89 = scmp.ne.s32.totalorder %s75, %s76
      %p90 = scmp.eq.s32.totalorder %s21, 1
      %p91 = por %p89, %p90
      %p93 = scmp.ne.s32.totalorder %s76, %s92
      %p94 = scmp.eq.s32.totalorder %s21, 0
      %p95 = por %p93, %p94
      %p96 = scmp.le.s32.totalorder 1, %s15
      %p97 = scmp.lt.s32.totalorder %s15, 3
      %p98 = pnand %p96, %p97
      %p99 = pneg %p98
      // Predicated region
      $region9: #{tpu_custom_call.1} parent=5 // pred_check
        _
      $region10: #{tpu_custom_call.1} parent=5 // pred_check_branch
        %101 = sbr.rel (%p98) target = $region12
      $region11: #{tpu_custom_call.1} parent=5 // pred_region
        %s102 = ssub.s32 %s15, 1
        // Predicated region
        $region13: #{tpu_custom_call.1} parent=11 // pred_check
          %p103 = pneg %p62
        $region14: #{tpu_custom_call.1} parent=11 // pred_check_branch
          %105 = sbr.rel (%p103) target = $region16
        $region15: #{tpu_custom_call.1} parent=11 // pred_region
          %s107 = ssub.s32 16384, 16384
          %108 = vsyncadd [#allocation6], %s107
          %s109 = sshll.u32 [#allocation5], 4
          %s110 = int_to_ptr.vmem [resolvable:$true] %s109
          %115 = dma.hbm_to_vmem [thread:$0]  %s1, 16384, %s110, [#allocation6], 128, 128, 8
        $region16: #{tpu_custom_call.1} parent=11 // pred_fallthru
          _
      $region12: #{tpu_custom_call.1} parent=5 // pred_fallthru
        _
      %p116 = scmp.lt.s32.totalorder %s15, 2
      // Predicated region
      $region17: #{tpu_custom_call.1} parent=5 // pred_check
        %p117 = pneg %p116
      $region18: #{tpu_custom_call.1} parent=5 // pred_check_branch
        %119 = sbr.rel (%p117) target = $region20
      $region19: #{tpu_custom_call.1} parent=5 // pred_region
        // Predicated region
        $region21: #{tpu_custom_call.1} parent=19 // pred_check
          %p120 = pneg %p35
        $region22: #{tpu_custom_call.1} parent=19 // pred_check_branch
          %122 = sbr.rel (%p120) target = $region24
        $region23: #{tpu_custom_call.1} parent=19 // pred_region
          %s123 = sand.u32 %s25, 1
          %s124 = scalar_lea.sflag [#allocation3], %s123
          %s125 = sand.u32 %s25, 1
          %s126 = smul.addr %s125, 64
          %s127 = scalar_lea.vmem [#allocation2], %s126
          %s129 = ssub.s32 1024, 1024
          %130 = vsyncadd %s124, %s129
          %s131 = smul.addr %s15, 8
          %s132 = smul.addr %s131, 128
          %s133 = scalar_lea.hbm %s0, %s132
          %s135 = sshll.u32 %s127, 4
          %s136 = int_to_ptr.vmem [resolvable:$true] %s135
          %138 = dma.hbm_to_vmem [thread:$0]  %s133, 1024, %s136, %s124
        $region24: #{tpu_custom_call.1} parent=19 // pred_fallthru
          _
      $region20: #{tpu_custom_call.1} parent=5 // pred_fallthru
        _
      %p139 = scmp.le.s32.totalorder 1, %s15
      %p140 = scmp.lt.s32.totalorder %s15, 3
      %p141 = pnand %p139, %p140
      %p142 = pneg %p141
      // Predicated region
      $region25: #{tpu_custom_call.1} parent=5 // pred_check
        _
      $region26: #{tpu_custom_call.1} parent=5 // pred_check_branch
        %144 = sbr.rel (%p141) target = $region28
      $region27: #{tpu_custom_call.1} parent=5 // pred_region
        %s145 = ssub.s32 %s15, 1
        %s146 = sand.u32 %s28, 1
        %s147 = scalar_lea.sflag [#allocation3], %s146
        %s148 = sand.u32 %s28, 1
        %s149 = smul.addr %s148, 64
        %s150 = scalar_lea.vmem [#allocation2], %s149
        // Predicated region
        $region29: #{tpu_custom_call.1} parent=27 // pred_check
          %p151 = pneg %p41
        $region30: #{tpu_custom_call.1} parent=27 // pred_check_branch
          %153 = sbr.rel (%p151) target = $region32
        $region31: #{tpu_custom_call.1} parent=27 // pred_region
          %154 = dma.done %s147, 1024
        $region32: #{tpu_custom_call.1} parent=27 // pred_fallthru
          _
        // Predicated region
        $region33: #{tpu_custom_call.1} parent=27 // pred_check
          %p155 = pneg %p62
        $region34: #{tpu_custom_call.1} parent=27 // pred_check_branch
          %157 = sbr.rel (%p155) target = $region36
        $region35: #{tpu_custom_call.1} parent=27 // pred_region
          %158 = dma.done [#allocation6], 16384
        $region36: #{tpu_custom_call.1} parent=27 // pred_fallthru
          _
        %s159 = sand.u32 %s28, 1
        %s160 = scalar_lea.sflag [#allocation3], %s159
        %s161 = sand.u32 %s28, 1
        %s162 = smul.addr %s161, 64
        %s163 = scalar_lea.vmem [#allocation2], %s162
        %p164 = pneg %p41
        %p165 = pneg %p38
        %p166 = pneg %p62
        %p167 = pneg %p59
        %p168 = pneg %p88
        %p169 = pneg %p85
        %s170 = sand.u32 %s75, 1
        %s171 = scalar_lea.sflag [#allocation4], %s170
        %s172 = sand.u32 %s75, 1
        %s173 = smul.addr %s172, 8
        %s174 = scalar_lea.vmem [#allocation7], %s173
        %v175 = vld [vmem:[%s150] sm:$0xff]
        %v176 = vld [vmem:[%s150 + $0x8] sm:$0xff]
        %v177 = vld [vmem:[%s150 + $0x10] sm:$0xff]
        %v178 = vld [vmem:[%s150 + $0x18] sm:$0xff]
        %v179 = vld [vmem:[%s150 + $0x20] sm:$0xff]
        %v180 = vld [vmem:[%s150 + $0x28] sm:$0xff]
        %v181 = vld [vmem:[%s150 + $0x30] sm:$0xff]
        %v182 = vld [vmem:[%s150 + $0x38] sm:$0xff]
        %v183 = vld [vmem:[#allocation5] sm:$0xff]
        %v184 = vld [vmem:[#allocation5 + $0x8] sm:$0xff]
        %v185 = vld [vmem:[#allocation5 + $0x10] sm:$0xff]
        %v186 = vld [vmem:[#allocation5 + $0x18] sm:$0xff]
        %v187 = vld [vmem:[#allocation5 + $0x20] sm:$0xff]
        %v188 = vld [vmem:[#allocation5 + $0x28] sm:$0xff]
        %v189 = vld [vmem:[#allocation5 + $0x30] sm:$0xff]
        %v190 = vld [vmem:[#allocation5 + $0x38] sm:$0xff]
        %v191 = vld [vmem:[#allocation5 + $0x40] sm:$0xff]
        %v192 = vld [vmem:[#allocation5 + $0x48] sm:$0xff]
        %v193 = vld [vmem:[#allocation5 + $0x50] sm:$0xff]
        %v194 = vld [vmem:[#allocation5 + $0x58] sm:$0xff]
        %v195 = vld [vmem:[#allocation5 + $0x60] sm:$0xff]
        %v196 = vld [vmem:[#allocation5 + $0x68] sm:$0xff]
        %v197 = vld [vmem:[#allocation5 + $0x70] sm:$0xff]
        %v198 = vld [vmem:[#allocation5 + $0x78] sm:$0xff]
        %v199 = vld [vmem:[#allocation5 + $0x80] sm:$0xff]
        %v200 = vld [vmem:[#allocation5 + $0x88] sm:$0xff]
        %v201 = vld [vmem:[#allocation5 + $0x90] sm:$0xff]
        %v202 = vld [vmem:[#allocation5 + $0x98] sm:$0xff]
        %v203 = vld [vmem:[#allocation5 + $0xa0] sm:$0xff]
        %v204 = vld [vmem:[#allocation5 + $0xa8] sm:$0xff]
        %v205 = vld [vmem:[#allocation5 + $0xb0] sm:$0xff]
        %v206 = vld [vmem:[#allocation5 + $0xb8] sm:$0xff]
        %v207 = vld [vmem:[#allocation5 + $0xc0] sm:$0xff]
        %v208 = vld [vmem:[#allocation5 + $0xc8] sm:$0xff]
        %v209 = vld [vmem:[#allocation5 + $0xd0] sm:$0xff]
        %v210 = vld [vmem:[#allocation5 + $0xd8] sm:$0xff]
        %v211 = vld [vmem:[#allocation5 + $0xe0] sm:$0xff]
        %v212 = vld [vmem:[#allocation5 + $0xe8] sm:$0xff]
        %v213 = vld [vmem:[#allocation5 + $0xf0] sm:$0xff]
        %v214 = vld [vmem:[#allocation5 + $0xf8] sm:$0xff]
        %v215 = vld [vmem:[#allocation5 + $0x100] sm:$0xff]
        %v216 = vld [vmem:[#allocation5 + $0x108] sm:$0xff]
        %v217 = vld [vmem:[#allocation5 + $0x110] sm:$0xff]
        %v218 = vld [vmem:[#allocation5 + $0x118] sm:$0xff]
        %v219 = vld [vmem:[#allocation5 + $0x120] sm:$0xff]
        %v220 = vld [vmem:[#allocation5 + $0x128] sm:$0xff]
        %v221 = vld [vmem:[#allocation5 + $0x130] sm:$0xff]
        %v222 = vld [vmem:[#allocation5 + $0x138] sm:$0xff]
        %v223 = vld [vmem:[#allocation5 + $0x140] sm:$0xff]
        %v224 = vld [vmem:[#allocation5 + $0x148] sm:$0xff]
        %v225 = vld [vmem:[#allocation5 + $0x150] sm:$0xff]
        %v226 = vld [vmem:[#allocation5 + $0x158] sm:$0xff]
        %v227 = vld [vmem:[#allocation5 + $0x160] sm:$0xff]
        %v228 = vld [vmem:[#allocation5 + $0x168] sm:$0xff]
        %v229 = vld [vmem:[#allocation5 + $0x170] sm:$0xff]
        %v230 = vld [vmem:[#allocation5 + $0x178] sm:$0xff]
        %v231 = vld [vmem:[#allocation5 + $0x180] sm:$0xff]
        %v232 = vld [vmem:[#allocation5 + $0x188] sm:$0xff]
        %v233 = vld [vmem:[#allocation5 + $0x190] sm:$0xff]
        %v234 = vld [vmem:[#allocation5 + $0x198] sm:$0xff]
        %v235 = vld [vmem:[#allocation5 + $0x1a0] sm:$0xff]
        %v236 = vld [vmem:[#allocation5 + $0x1a8] sm:$0xff]
        %v237 = vld [vmem:[#allocation5 + $0x1b0] sm:$0xff]
        %v238 = vld [vmem:[#allocation5 + $0x1b8] sm:$0xff]
        %v239 = vld [vmem:[#allocation5 + $0x1c0] sm:$0xff]
        %v240 = vld [vmem:[#allocation5 + $0x1c8] sm:$0xff]
        %v241 = vld [vmem:[#allocation5 + $0x1d0] sm:$0xff]
        %v242 = vld [vmem:[#allocation5 + $0x1d8] sm:$0xff]
        %v243 = vld [vmem:[#allocation5 + $0x1e0] sm:$0xff]
        %v244 = vld [vmem:[#allocation5 + $0x1e8] sm:$0xff]
        %v245 = vld [vmem:[#allocation5 + $0x1f0] sm:$0xff]
        %v246 = vld [vmem:[#allocation5 + $0x1f8] sm:$0xff]
        %v247 = vld [vmem:[#allocation5 + $0x200] sm:$0xff]
        %v248 = vld [vmem:[#allocation5 + $0x208] sm:$0xff]
        %v249 = vld [vmem:[#allocation5 + $0x210] sm:$0xff]
        %v250 = vld [vmem:[#allocation5 + $0x218] sm:$0xff]
        %v251 = vld [vmem:[#allocation5 + $0x220] sm:$0xff]
        %v252 = vld [vmem:[#allocation5 + $0x228] sm:$0xff]
        %v253 = vld [vmem:[#allocation5 + $0x230] sm:$0xff]
        %v254 = vld [vmem:[#allocation5 + $0x238] sm:$0xff]
        %v255 = vld [vmem:[#allocation5 + $0x240] sm:$0xff]
        %v256 = vld [vmem:[#allocation5 + $0x248] sm:$0xff]
        %v257 = vld [vmem:[#allocation5 + $0x250] sm:$0xff]
        %v258 = vld [vmem:[#allocation5 + $0x258] sm:$0xff]
        %v259 = vld [vmem:[#allocation5 + $0x260] sm:$0xff]
        %v260 = vld [vmem:[#allocation5 + $0x268] sm:$0xff]
        %v261 = vld [vmem:[#allocation5 + $0x270] sm:$0xff]
        %v262 = vld [vmem:[#allocation5 + $0x278] sm:$0xff]
        %v263 = vld [vmem:[#allocation5 + $0x280] sm:$0xff]
        %v264 = vld [vmem:[#allocation5 + $0x288] sm:$0xff]
        %v265 = vld [vmem:[#allocation5 + $0x290] sm:$0xff]
        %v266 = vld [vmem:[#allocation5 + $0x298] sm:$0xff]
        %v267 = vld [vmem:[#allocation5 + $0x2a0] sm:$0xff]
        %v268 = vld [vmem:[#allocation5 + $0x2a8] sm:$0xff]
        %v269 = vld [vmem:[#allocation5 + $0x2b0] sm:$0xff]
        %v270 = vld [vmem:[#allocation5 + $0x2b8] sm:$0xff]
        %v271 = vld [vmem:[#allocation5 + $0x2c0] sm:$0xff]
        %v272 = vld [vmem:[#allocation5 + $0x2c8] sm:$0xff]
        %v273 = vld [vmem:[#allocation5 + $0x2d0] sm:$0xff]
        %v274 = vld [vmem:[#allocation5 + $0x2d8] sm:$0xff]
        %v275 = vld [vmem:[#allocation5 + $0x2e0] sm:$0xff]
        %v276 = vld [vmem:[#allocation5 + $0x2e8] sm:$0xff]
        %v277 = vld [vmem:[#allocation5 + $0x2f0] sm:$0xff]
        %v278 = vld [vmem:[#allocation5 + $0x2f8] sm:$0xff]
        %v279 = vld [vmem:[#allocation5 + $0x300] sm:$0xff]
        %v280 = vld [vmem:[#allocation5 + $0x308] sm:$0xff]
        %v281 = vld [vmem:[#allocation5 + $0x310] sm:$0xff]
        %v282 = vld [vmem:[#allocation5 + $0x318] sm:$0xff]
        %v283 = vld [vmem:[#allocation5 + $0x320] sm:$0xff]
        %v284 = vld [vmem:[#allocation5 + $0x328] sm:$0xff]
        %v285 = vld [vmem:[#allocation5 + $0x330] sm:$0xff]
        %v286 = vld [vmem:[#allocation5 + $0x338] sm:$0xff]
        %v287 = vld [vmem:[#allocation5 + $0x340] sm:$0xff]
        %v288 = vld [vmem:[#allocation5 + $0x348] sm:$0xff]
        %v289 = vld [vmem:[#allocation5 + $0x350] sm:$0xff]
        %v290 = vld [vmem:[#allocation5 + $0x358] sm:$0xff]
        %v291 = vld [vmem:[#allocation5 + $0x360] sm:$0xff]
        %v292 = vld [vmem:[#allocation5 + $0x368] sm:$0xff]
        %v293 = vld [vmem:[#allocation5 + $0x370] sm:$0xff]
        %v294 = vld [vmem:[#allocation5 + $0x378] sm:$0xff]
        %v295 = vld [vmem:[#allocation5 + $0x380] sm:$0xff]
        %v296 = vld [vmem:[#allocation5 + $0x388] sm:$0xff]
        %v297 = vld [vmem:[#allocation5 + $0x390] sm:$0xff]
        %v298 = vld [vmem:[#allocation5 + $0x398] sm:$0xff]
        %v299 = vld [vmem:[#allocation5 + $0x3a0] sm:$0xff]
        %v300 = vld [vmem:[#allocation5 + $0x3a8] sm:$0xff]
        %v301 = vld [vmem:[#allocation5 + $0x3b0] sm:$0xff]
        %v302 = vld [vmem:[#allocation5 + $0x3b8] sm:$0xff]
        %v303 = vld [vmem:[#allocation5 + $0x3c0] sm:$0xff]
        %v304 = vld [vmem:[#allocation5 + $0x3c8] sm:$0xff]
        %v305 = vld [vmem:[#allocation5 + $0x3d0] sm:$0xff]
        %v306 = vld [vmem:[#allocation5 + $0x3d8] sm:$0xff]
        %v307 = vld [vmem:[#allocation5 + $0x3e0] sm:$0xff]
        %v308 = vld [vmem:[#allocation5 + $0x3e8] sm:$0xff]
        %v309 = vld [vmem:[#allocation5 + $0x3f0] sm:$0xff]
        %v310 = vld [vmem:[#allocation5 + $0x3f8] sm:$0xff]
        %311 = vmatprep.subr.mxu0 0.0
        %312 = vmatpush1.msra.mxu0 %v183
        %313 = vmatprep.subr.mxu0 0.0
        %314 = vmatpush1.msra.mxu0 %v184
        %315 = vmatprep.subr.mxu0 0.0
        %316 = vmatpush1.msra.mxu0 %v185
        %317 = vmatprep.subr.mxu0 0.0
        %318 = vmatpush1.msra.mxu0 %v186
        %319 = vmatprep.subr.mxu0 0.0
        %320 = vmatpush1.msra.mxu0 %v187
        %321 = vmatprep.subr.mxu0 0.0
        %322 = vmatpush1.msra.mxu0 %v188
        %323 = vmatprep.subr.mxu0 0.0
        %324 = vmatpush1.msra.mxu0 %v189
        %325 = vmatprep.subr.mxu0 0.0
        %326 = vmatpush1.msra.mxu0 %v190
        %327 = vmatprep.subr.mxu0 0.0
        %328 = vmatpush1.msra.mxu0 %v191
        %329 = vmatprep.subr.mxu0 0.0
        %330 = vmatpush1.msra.mxu0 %v192
        %331 = vmatprep.subr.mxu0 0.0
        %332 = vmatpush1.msra.mxu0 %v193
        %333 = vmatprep.subr.mxu0 0.0
        %334 = vmatpush1.msra.mxu0 %v194
        %335 = vmatprep.subr.mxu0 0.0
        %336 = vmatpush1.msra.mxu0 %v195
        %337 = vmatprep.subr.mxu0 0.0
        %338 = vmatpush1.msra.mxu0 %v196
        %339 = vmatprep.subr.mxu0 0.0
        %340 = vmatpush1.msra.mxu0 %v197
        %341 = vmatprep.subr.mxu0 0.0
        %342 = vmatpush1.msra.mxu0 %v198
        %343 = vmatprep.subr.mxu0 0.0
        %344 = vmatpush1.msra.mxu0 %v199
        %345 = vmatprep.subr.mxu0 0.0
        %346 = vmatpush1.msra.mxu0 %v200
        %347 = vmatprep.subr.mxu0 0.0
        %348 = vmatpush1.msra.mxu0 %v201
        %349 = vmatprep.subr.mxu0 0.0
        %350 = vmatpush1.msra.mxu0 %v202
        %351 = vmatprep.subr.mxu0 0.0
        %352 = vmatpush1.msra.mxu0 %v203
        %353 = vmatprep.subr.mxu0 0.0
        %354 = vmatpush1.msra.mxu0 %v204
        %355 = vmatprep.subr.mxu0 0.0
        %356 = vmatpush1.msra.mxu0 %v205
        %357 = vmatprep.subr.mxu0 0.0
        %358 = vmatpush1.msra.mxu0 %v206
        %359 = vmatprep.subr.mxu0 0.0
        %360 = vmatpush1.msra.mxu0 %v207
        %361 = vmatprep.subr.mxu0 0.0
        %362 = vmatpush1.msra.mxu0 %v208
        %363 = vmatprep.subr.mxu0 0.0
        %364 = vmatpush1.msra.mxu0 %v209
        %365 = vmatprep.subr.mxu0 0.0
        %366 = vmatpush1.msra.mxu0 %v210
        %367 = vmatprep.subr.mxu0 0.0
        %368 = vmatpush1.msra.mxu0 %v211
        %369 = vmatprep.subr.mxu0 0.0
        %370 = vmatpush1.msra.mxu0 %v212
        %371 = vmatprep.subr.mxu0 0.0
        %372 = vmatpush1.msra.mxu0 %v213
        %373 = vmatprep.subr.mxu0 0.0
        %374 = vmatpush1.msra.mxu0 %v214
        %375 = vmatprep.mubr.f32.mxu0 %v176
        %376 = vmatmul.mubr.f32.gmra.mrb[0].mxu0 %v175
        %v377 = vpop.f32.mrb[0].mxu0
        %v378 = vadd.f32 0.0, %v377
        %v379 = vpop.f32.mrb[0].mxu0
        %380 = vdwg.mxu0
        %381 = vmatprep.subr.mxu0 0.0
        %382 = vmatpush1.msra.mxu0 %v215
        %383 = vmatprep.subr.mxu0 0.0
        %384 = vmatpush1.msra.mxu0 %v216
        %385 = vmatprep.subr.mxu0 0.0
        %386 = vmatpush1.msra.mxu0 %v217
        %387 = vmatprep.subr.mxu0 0.0
        %388 = vmatpush1.msra.mxu0 %v218
        %389 = vmatprep.subr.mxu0 0.0
        %390 = vmatpush1.msra.mxu0 %v219
        %391 = vmatprep.subr.mxu0 0.0
        %392 = vmatpush1.msra.mxu0 %v220
        %393 = vmatprep.subr.mxu0 0.0
        %394 = vmatpush1.msra.mxu0 %v221
        %395 = vmatprep.subr.mxu0 0.0
        %396 = vmatpush1.msra.mxu0 %v222
        %397 = vmatprep.subr.mxu0 0.0
        %398 = vmatpush1.msra.mxu0 %v223
        %399 = vmatprep.subr.mxu0 0.0
        %400 = vmatpush1.msra.mxu0 %v224
        %401 = vmatprep.subr.mxu0 0.0
        %402 = vmatpush1.msra.mxu0 %v225
        %403 = vmatprep.subr.mxu0 0.0
        %404 = vmatpush1.msra.mxu0 %v226
        %405 = vmatprep.subr.mxu0 0.0
        %406 = vmatpush1.msra.mxu0 %v227
        %407 = vmatprep.subr.mxu0 0.0
        %408 = vmatpush1.msra.mxu0 %v228
        %409 = vmatprep.subr.mxu0 0.0
        %410 = vmatpush1.msra.mxu0 %v229
        %411 = vmatprep.subr.mxu0 0.0
        %412 = vmatpush1.msra.mxu0 %v230
        %413 = vmatprep.subr.mxu0 0.0
        %414 = vmatpush1.msra.mxu0 %v231
        %415 = vmatprep.subr.mxu0 0.0
        %416 = vmatpush1.msra.mxu0 %v232
        %417 = vmatprep.subr.mxu0 0.0
        %418 = vmatpush1.msra.mxu0 %v233
        %419 = vmatprep.subr.mxu0 0.0
        %420 = vmatpush1.msra.mxu0 %v234
        %421 = vmatprep.subr.mxu0 0.0
        %422 = vmatpush1.msra.mxu0 %v235
        %423 = vmatprep.subr.mxu0 0.0
        %424 = vmatpush1.msra.mxu0 %v236
        %425 = vmatprep.subr.mxu0 0.0
        %426 = vmatpush1.msra.mxu0 %v237
        %427 = vmatprep.subr.mxu0 0.0
        %428 = vmatpush1.msra.mxu0 %v238
        %429 = vmatprep.subr.mxu0 0.0
        %430 = vmatpush1.msra.mxu0 %v239
        %431 = vmatprep.subr.mxu0 0.0
        %432 = vmatpush1.msra.mxu0 %v240
        %433 = vmatprep.subr.mxu0 0.0
        %434 = vmatpush1.msra.mxu0 %v241
        %435 = vmatprep.subr.mxu0 0.0
        %436 = vmatpush1.msra.mxu0 %v242
        %437 = vmatprep.subr.mxu0 0.0
        %438 = vmatpush1.msra.mxu0 %v243
        %439 = vmatprep.subr.mxu0 0.0
        %440 = vmatpush1.msra.mxu0 %v244
        %441 = vmatprep.subr.mxu0 0.0
        %442 = vmatpush1.msra.mxu0 %v245
        %443 = vmatprep.subr.mxu0 0.0
        %444 = vmatpush1.msra.mxu0 %v246
        %445 = vmatprep.mubr.f32.mxu0 %v178
        %446 = vmatmul.mubr.f32.gmra.mrb[0].mxu0 %v177
        %v447 = vpop.f32.mrb[0].mxu0
        %v448 = vadd.f32 %v378, %v447
        %v449 = vpop.f32.mrb[0].mxu0
        %450 = vdwg.mxu0
        %451 = vmatprep.subr.mxu0 0.0
        %452 = vmatpush1.msra.mxu0 %v247
        %453 = vmatprep.subr.mxu0 0.0
        %454 = vmatpush1.msra.mxu0 %v248
        %455 = vmatprep.subr.mxu0 0.0
        %456 = vmatpush1.msra.mxu0 %v249
        %457 = vmatprep.subr.mxu0 0.0
        %458 = vmatpush1.msra.mxu0 %v250
        %459 = vmatprep.subr.mxu0 0.0
        %460 = vmatpush1.msra.mxu0 %v251
        %461 = vmatprep.subr.mxu0 0.0
        %462 = vmatpush1.msra.mxu0 %v252
        %463 = vmatprep.subr.mxu0 0.0
        %464 = vmatpush1.msra.mxu0 %v253
        %465 = vmatprep.subr.mxu0 0.0
        %466 = vmatpush1.msra.mxu0 %v254
        %467 = vmatprep.subr.mxu0 0.0
        %468 = vmatpush1.msra.mxu0 %v255
        %469 = vmatprep.subr.mxu0 0.0
        %470 = vmatpush1.msra.mxu0 %v256
        %471 = vmatprep.subr.mxu0 0.0
        %472 = vmatpush1.msra.mxu0 %v257
        %473 = vmatprep.subr.mxu0 0.0
        %474 = vmatpush1.msra.mxu0 %v258
        %475 = vmatprep.subr.mxu0 0.0
        %476 = vmatpush1.msra.mxu0 %v259
        %477 = vmatprep.subr.mxu0 0.0
        %478 = vmatpush1.msra.mxu0 %v260
        %479 = vmatprep.subr.mxu0 0.0
        %480 = vmatpush1.msra.mxu0 %v261
        %481 = vmatprep.subr.mxu0 0.0
        %482 = vmatpush1.msra.mxu0 %v262
        %483 = vmatprep.subr.mxu0 0.0
        %484 = vmatpush1.msra.mxu0 %v263
        %485 = vmatprep.subr.mxu0 0.0
        %486 = vmatpush1.msra.mxu0 %v264
        %487 = vmatprep.subr.mxu0 0.0
        %488 = vmatpush1.msra.mxu0 %v265
        %489 = vmatprep.subr.mxu0 0.0
        %490 = vmatpush1.msra.mxu0 %v266
        %491 = vmatprep.subr.mxu0 0.0
        %492 = vmatpush1.msra.mxu0 %v267
        %493 = vmatprep.subr.mxu0 0.0
        %494 = vmatpush1.msra.mxu0 %v268
        %495 = vmatprep.subr.mxu0 0.0
        %496 = vmatpush1.msra.mxu0 %v269
        %497 = vmatprep.subr.mxu0 0.0
        %498 = vmatpush1.msra.mxu0 %v270
        %499 = vmatprep.subr.mxu0 0.0
        %500 = vmatpush1.msra.mxu0 %v271
        %501 = vmatprep.subr.mxu0 0.0
        %502 = vmatpush1.msra.mxu0 %v272
        %503 = vmatprep.subr.mxu0 0.0
        %504 = vmatpush1.msra.mxu0 %v273
        %505 = vmatprep.subr.mxu0 0.0
        %506 = vmatpush1.msra.mxu0 %v274
        %507 = vmatprep.subr.mxu0 0.0
        %508 = vmatpush1.msra.mxu0 %v275
        %509 = vmatprep.subr.mxu0 0.0
        %510 = vmatpush1.msra.mxu0 %v276
        %511 = vmatprep.subr.mxu0 0.0
        %512 = vmatpush1.msra.mxu0 %v277
        %513 = vmatprep.subr.mxu0 0.0
        %514 = vmatpush1.msra.mxu0 %v278
        %515 = vmatprep.mubr.f32.mxu0 %v180
        %516 = vmatmul.mubr.f32.gmra.mrb[0].mxu0 %v179
        %v517 = vpop.f32.mrb[0].mxu0
        %v518 = vadd.f32 %v448, %v517
        %v519 = vpop.f32.mrb[0].mxu0
        %520 = vdwg.mxu0
        %521 = vmatprep.subr.mxu0 0.0
        %522 = vmatpush1.msra.mxu0 %v279
        %523 = vmatprep.subr.mxu0 0.0
        %524 = vmatpush1.msra.mxu0 %v280
        %525 = vmatprep.subr.mxu0 0.0
        %526 = vmatpush1.msra.mxu0 %v281
        %527 = vmatprep.subr.mxu0 0.0
        %528 = vmatpush1.msra.mxu0 %v282
        %529 = vmatprep.subr.mxu0 0.0
        %530 = vmatpush1.msra.mxu0 %v283
        %531 = vmatprep.subr.mxu0 0.0
        %532 = vmatpush1.msra.mxu0 %v284
        %533 = vmatprep.subr.mxu0 0.0
        %534 = vmatpush1.msra.mxu0 %v285
        %535 = vmatprep.subr.mxu0 0.0
        %536 = vmatpush1.msra.mxu0 %v286
        %537 = vmatprep.subr.mxu0 0.0
        %538 = vmatpush1.msra.mxu0 %v287
        %539 = vmatprep.subr.mxu0 0.0
        %540 = vmatpush1.msra.mxu0 %v288
        %541 = vmatprep.subr.mxu0 0.0
        %542 = vmatpush1.msra.mxu0 %v289
        %543 = vmatprep.subr.mxu0 0.0
        %544 = vmatpush1.msra.mxu0 %v290
        %545 = vmatprep.subr.mxu0 0.0
        %546 = vmatpush1.msra.mxu0 %v291
        %547 = vmatprep.subr.mxu0 0.0
        %548 = vmatpush1.msra.mxu0 %v292
        %549 = vmatprep.subr.mxu0 0.0
        %550 = vmatpush1.msra.mxu0 %v293
        %551 = vmatprep.subr.mxu0 0.0
        %552 = vmatpush1.msra.mxu0 %v294
        %553 = vmatprep.subr.mxu0 0.0
        %554 = vmatpush1.msra.mxu0 %v295
        %555 = vmatprep.subr.mxu0 0.0
        %556 = vmatpush1.msra.mxu0 %v296
        %557 = vmatprep.subr.mxu0 0.0
        %558 = vmatpush1.msra.mxu0 %v297
        %559 = vmatprep.subr.mxu0 0.0
        %560 = vmatpush1.msra.mxu0 %v298
        %561 = vmatprep.subr.mxu0 0.0
        %562 = vmatpush1.msra.mxu0 %v299
        %563 = vmatprep.subr.mxu0 0.0
        %564 = vmatpush1.msra.mxu0 %v300
        %565 = vmatprep.subr.mxu0 0.0
        %566 = vmatpush1.msra.mxu0 %v301
        %567 = vmatprep.subr.mxu0 0.0
        %568 = vmatpush1.msra.mxu0 %v302
        %569 = vmatprep.subr.mxu0 0.0
        %570 = vmatpush1.msra.mxu0 %v303
        %571 = vmatprep.subr.mxu0 0.0
        %572 = vmatpush1.msra.mxu0 %v304
        %573 = vmatprep.subr.mxu0 0.0
        %574 = vmatpush1.msra.mxu0 %v305
        %575 = vmatprep.subr.mxu0 0.0
        %576 = vmatpush1.msra.mxu0 %v306
        %577 = vmatprep.subr.mxu0 0.0
        %578 = vmatpush1.msra.mxu0 %v307
        %579 = vmatprep.subr.mxu0 0.0
        %580 = vmatpush1.msra.mxu0 %v308
        %581 = vmatprep.subr.mxu0 0.0
        %582 = vmatpush1.msra.mxu0 %v309
        %583 = vmatprep.subr.mxu0 0.0
        %584 = vmatpush1.msra.mxu0 %v310
        %585 = vmatprep.mubr.f32.mxu0 %v182
        %586 = vmatmul.mubr.f32.gmra.mrb[0].mxu0 %v181
        %v587 = vpop.f32.mrb[0].mxu0
        %v588 = vadd.f32 %v518, %v587
        %v589 = vpop.f32.mrb[0].mxu0
        %590 = vdwg.mxu0
        %591 = vst [vmem:[%s174] sm:$0xff] %v588
        %s592 = sand.u32 %s75, 1
        %s593 = scalar_lea.sflag [#allocation4], %s592
        %s594 = sand.u32 %s75, 1
        %s595 = smul.addr %s594, 8
        %s596 = scalar_lea.vmem [#allocation7], %s595
        // Predicated region
        $region37: #{tpu_custom_call.1} parent=27 // pred_check
          %p597 = pneg %p85
        $region38: #{tpu_custom_call.1} parent=27 // pred_check_branch
          %599 = sbr.rel (%p597) target = $region40
        $region39: #{tpu_custom_call.1} parent=27 // pred_region
          %s601 = ssub.s32 128, 128
          %602 = vsyncadd %s593, %s601
          %s603 = smul.addr %s20, 128
          %s604 = scalar_lea.hbm %s2, %s603
          %s606 = sshll.u32 %s596, 4
          %s607 = int_to_ptr.vmem [resolvable:$true] %s606
          %609 = dma.vmem_to_hbm [thread:$0]  %s607, 128, %s604, %s593
        $region40: #{tpu_custom_call.1} parent=27 // pred_fallthru
          _
      $region28: #{tpu_custom_call.1} parent=5 // pred_fallthru
        _
      %p610 = scmp.le.s32.totalorder 2, %s15
      // Predicated region
      $region41: #{tpu_custom_call.1} parent=5 // pred_check
        %p611 = pneg %p610
      $region42: #{tpu_custom_call.1} parent=5 // pred_check_branch
        %613 = sbr.rel (%p611) target = $region44
      $region43: #{tpu_custom_call.1} parent=5 // pred_region
        %s614 = ssub.s32 %s15, 2
        // Predicated region
        $region45: #{tpu_custom_call.1} parent=43 // pred_check
          %p615 = pneg %p91
        $region46: #{tpu_custom_call.1} parent=43 // pred_check_branch
          %617 = sbr.rel (%p615) target = $region48
        $region47: #{tpu_custom_call.1} parent=43 // pred_region
          %s618 = sand.u32 %s76, 1
          %s619 = scalar_lea.sflag [#allocation4], %s618
          %s620 = sand.u32 %s76, 1
          %s621 = smul.addr %s620, 8
          %s622 = scalar_lea.vmem [#allocation7], %s621
          %623 = dma.done %s619, 128
        $region48: #{tpu_custom_call.1} parent=43 // pred_fallthru
          _
      $region44: #{tpu_custom_call.1} parent=5 // pred_fallthru
        _
    $region6: #{tpu_custom_call.1} parent=1 // loop_footer
      %s19 = sadd.s32 1, %s15
    $region7: #{tpu_custom_call.1} parent=1 // loop_footer_branch
      %14 = sbr.rel target = $region3
    $region8: #{tpu_custom_call.1} parent=1 // loop_exit
      _
    %624 = vsyncpa [#allocation3], 1
    %s625 = scalar_lea.sflag [#allocation3], 1
    %626 = vsyncpa %s625, 1
    %627 = vsyncpa [#allocation6], 1
    %628 = vsyncpa [#allocation4], 1
    %s629 = scalar_lea.sflag [#allocation4], 1
    %630 = vsyncpa %s629, 1

</llo_original>
